<compile_context>
chip_gen: v7x
topology: tpu7x:2x2x1
jax: 0.10.0
libtpu: 0.0.40
codegen_flags: <defaults>
</compile_context>

<pallas_src>
import functools

import jax
import jax.numpy as jnp
from jax.experimental import pallas as pl
from jax.experimental.pallas import tpu as pltpu

NUM_VOCAB = 5002
MAX_SEQ_LEN = 5
_VMEM_LIMIT = 48 * 1024 * 1024  # safe on v5e/v6e (128 MiB) and v7x (64 MiB)


# ----------------------------------------------------------------------------
# Kernel 1: mean graph pooling.
# Grid = (d_slabs, n_steps): feature-column slabs (parallel, for v7x megacore)
# x node tiles (arbitrary, reduction).  Resident f32 accumulators in VMEM.
# ----------------------------------------------------------------------------
def _pool_kernel(batch_ref, x_ref, out_ref, sum_ref, cnt_ref, *,
                 gpad, n_nodes, tile_n):
    step = pl.program_id(1)

    @pl.when(step == 0)
    def _init():
        sum_ref[...] = jnp.zeros_like(sum_ref)
        cnt_ref[...] = jnp.zeros_like(cnt_ref)

    b = batch_ref[...]                                           # (1, TN) int32
    gid = jax.lax.broadcasted_iota(jnp.int32, (gpad, tile_n), 0)
    onehot = gid == b                                            # (gpad, TN) bool
    x_blk = x_ref[...]                                           # (TN, Dslab) f32

    if n_nodes % tile_n != 0:
        # Ragged tail tile: mask OOB rows.  Mask x itself too so garbage/NaN
        # rows cannot poison the matmul via 0 * NaN.
        base = step * tile_n
        lane_idx = jax.lax.broadcasted_iota(jnp.int32, (1, tile_n), 1)
        row_idx = jax.lax.broadcasted_iota(jnp.int32, (tile_n, 1), 0)
        onehot = jnp.logical_and(onehot, lane_idx + base < n_nodes)
        x_blk = jnp.where(row_idx + base < n_nodes, x_blk,
                          jnp.zeros_like(x_blk))

    assign = onehot.astype(x_blk.dtype)                          # exact 0/1
    sum_ref[...] += jnp.dot(assign, x_blk,
                            preferred_element_type=jnp.float32)  # (gpad, Dslab)
    cnt_ref[...] += jnp.sum(onehot.astype(jnp.float32), axis=-1, keepdims=True)

    @pl.when(step == pl.num_programs(1) - 1)
    def _finalize():
        out_ref[...] = (sum_ref[...] /
                        jnp.maximum(cnt_ref[...], 1.0)).astype(out_ref.dtype)


def mean_pool(x, batch_idx, num_graphs, *, tile_n=None, d_slabs=None):
    n, d = x.shape
    gpad = max(16, pl.cdiv(num_graphs, 16) * 16)   # bf16-friendly sublane pack

    if d_slabs is None:
        d_slabs = 2 if (d % 256 == 0) else 1
    assert d % d_slabs == 0 and (d_slabs == 1 or (d // d_slabs) % 128 == 0)
    dslab = d // d_slabs

    if tile_n is None:
        tile_n = 4096 if d <= 256 else (2048 if d <= 512 else 1024)
    if n < 128:
        tile_n = n                              # single full-extent block
    else:
        tile_n = min(tile_n, (n // 128) * 128)  # 128-multiple, <= n
    n_steps = pl.cdiv(n, tile_n)

    b2d = batch_idx.astype(jnp.int32).reshape(1, n)

    kern = functools.partial(_pool_kernel, gpad=gpad, n_nodes=n, tile_n=tile_n)
    return pl.pallas_call(
        kern,
        out_shape=jax.ShapeDtypeStruct((gpad, d), jnp.float32),
        grid=(d_slabs, n_steps),
        in_specs=[
            pl.BlockSpec((1, tile_n), lambda s, i: (0, i)),
            pl.BlockSpec((tile_n, dslab), lambda s, i: (i, s)),
        ],
        out_specs=pl.BlockSpec((gpad, dslab), lambda s, i: (0, s)),
        scratch_shapes=[
            pltpu.VMEM((gpad, dslab), jnp.float32),   # running sum
            pltpu.VMEM((gpad, 1), jnp.float32),       # running node counts
        ],
        compiler_params=pltpu.CompilerParams(
            dimension_semantics=("parallel", "arbitrary"),
            vmem_limit_bytes=_VMEM_LIMIT),
    )(b2d, x)


# ----------------------------------------------------------------------------
# Kernel 2: 5 vocab-projection heads, grid over (head, vocab tile).
# bf16 weight streaming, f32 MXU accumulation, explicit f32 bias add.
# ----------------------------------------------------------------------------
def _heads_kernel(g_ref, w_ref, b_ref, o_ref):
    # g_ref: (Gpad, Dpad) bf16   w_ref: (1, Dpad, TV) bf16
    # b_ref: (1, TV) f32         o_ref: (1, Gpad, TV) f32
    acc = jnp.dot(g_ref[...], w_ref[0], preferred_element_type=jnp.float32)
    o_ref[0] = acc + b_ref[...]            # lane/sublane-dense, no reshape


def vocab_heads(graph_emb, w, b, *, tile_v=2560):
    gpad, dpad = graph_emb.shape
    h, dpad_w, vpad = w.shape
    assert dpad == dpad_w and vpad % tile_v == 0 and tile_v % 128 == 0
    return pl.pallas_call(
        _heads_kernel,
        out_shape=jax.ShapeDtypeStruct((h, gpad, vpad), jnp.float32),
        grid=(h, vpad // tile_v),
        in_specs=[
            pl.BlockSpec((gpad, dpad), lambda i, j: (0, 0)),     # resident LHS
            pl.BlockSpec((1, dpad, tile_v), lambda i, j: (i, 0, j)),
            pl.BlockSpec((1, tile_v), lambda i, j: (i, j)),
        ],
        out_specs=pl.BlockSpec((1, gpad, tile_v), lambda i, j: (i, 0, j)),
        compiler_params=pltpu.CompilerParams(
            dimension_semantics=("parallel", "parallel"),
            vmem_limit_bytes=_VMEM_LIMIT),
    )(graph_emb, w, b)


# ----------------------------------------------------------------------------
# Module-equivalent wrapper
# ----------------------------------------------------------------------------
class OGBCodeGraphHeadPallas:
    def __init__(self, dim_in, dim_out=None, L=1, key=jax.random.PRNGKey(42)):
        if L != 1:
            raise ValueError("Multilayer prediction heads are not supported.")
        self.dim_in = dim_in
        self.max_seq_len = MAX_SEQ_LEN
        self.num_vocab = NUM_VOCAB
        self.dpad = max(128, pl.cdiv(dim_in, 128) * 128)
        self.vpad = pl.cdiv(NUM_VOCAB, 128) * 128   # 5120

        # nn.Linear(dim_in, num_vocab) x 5 -> torch-like uniform init.
        wkey, bkey = jax.random.split(key)
        bound = 1.0 / jnp.sqrt(dim_in)
        w = jax.random.uniform(
            wkey, (MAX_SEQ_LEN, dim_in, NUM_VOCAB), jnp.float32, -bound, bound)
        b = jax.random.uniform(
            bkey, (MAX_SEQ_LEN, NUM_VOCAB), jnp.float32, -bound, bound)

        # Pad (D, V) to 128 multiples once in HBM; stream weights in bf16.
        w_pad = jnp.pad(
            w, ((0, 0), (0, self.dpad - dim_in), (0, self.vpad - NUM_VOCAB)))
        self.w = w_pad.astype(jnp.bfloat16)                         # (H, Dpad, Vpad)
        self.b = jnp.pad(b, ((0, 0), (0, self.vpad - NUM_VOCAB)))   # (H, Vpad) f32

    def __call__(self, batch, *, pool_tile_n=None):
        x, bidx = batch["x"], batch["batch"]
        num_graphs = batch["num_graphs"]
        n, d = x.shape
        assert d == self.dim_in

        # (gpad, d) f32, exact f32 mean pooling (no wrapper-side copy of x).
        graph_emb = mean_pool(x, bidx, num_graphs, tile_n=pool_tile_n)

        # Tiny (gpad, dpad) bf16 LHS for the heads matmuls.
        emb_p = jnp.pad(graph_emb.astype(jnp.bfloat16),
                        ((0, 0), (0, self.dpad - d)))

        out = vocab_heads(emb_p, self.w, self.b)        # (H, Gpad, Vpad) f32
        # NOTE: for very large G, keep padded logits and mask in the loss
        # instead of re-materializing the sliced tensor.
        out = out[:, :num_graphs, : self.num_vocab]

        pred_list = [out[i] for i in range(self.max_seq_len)]
        batch["pred_list"] = pred_list
        pred, true = pred_list, {"y_arr": batch["y_arr"], "y": batch["y"]}
        return pred, true


# ----------------------------------------------------------------------------
# Self-test
# ----------------------------------------------------------------------------
def _reference_preds(x, bidx, num_graphs, head):
    n, d = x.shape
    seg_sum = jax.ops.segment_sum(x, bidx, num_segments=num_graphs)
    counts = jax.ops.segment_sum(jnp.ones((n,), jnp.float32), bidx,
                                 num_segments=num_graphs)
    emb = (seg_sum / jnp.maximum(counts, 1.0)[:, None]).astype(jnp.bfloat16)
    refs = []
    for i in range(MAX_SEQ_LEN):
        refs.append(
            jnp.dot(emb, head.w[i, :d, :NUM_VOCAB],
                    preferred_element_type=jnp.float32) + head.b[i, :NUM_VOCAB])
    return refs


def _run_case(key, n, d, g, bidx=None, pool_tile_n=None):
    kx, kb, kp = jax.random.split(key, 3)
    x = jax.random.normal(kx, (n, d), jnp.float32)
    if bidx is None:
        bidx = jnp.sort(jax.random.randint(kb, (n,), 0, g, jnp.int32))

    head = OGBCodeGraphHeadPallas(d, dim_out=None, L=1, key=kp)
    batch = {
        "x": x,
        "batch": bidx,
        "num_graphs": g,
        "y_arr": jnp.zeros((g, MAX_SEQ_LEN), jnp.int32),
        "y": [["tok"] for _ in range(g)],   # passthrough, as in _apply_index
    }
    pred, true = head(batch, pool_tile_n=pool_tile_n)
    pred = [jax.block_until_ready(p) for p in pred]

    refs = _reference_preds(x, bidx, g, head)
    ok = True
    for i in range(MAX_SEQ_LEN):
        ok &= pred[i].shape == (g, NUM_VOCAB)
        ok &= bool(jnp.allclose(pred[i], refs[i], atol=1e-2, rtol=1e-2))
    ok &= true["y_arr"].shape == (g, MAX_SEQ_LEN)
    ok &= len(true["y"]) == g
    return ok


if __name__ == "__main__":
    key = jax.random.PRNGKey(0)
    k1, k2 = jax.random.split(key)

    # Case A: tiny shapes, single node tile, d not a multiple of 128.
    bidx_a = jnp.concatenate(
        [jnp.zeros((8,), jnp.int32), jnp.ones((8,), jnp.int32)])
    ok = _run_case(k1, n=16, d=32, g=2, bidx=bidx_a)

    # Case B: ragged node count (masked tail), multi-step accumulation,
    # two feature-column slabs (d % 256 == 0), random graph assignment.
    ok &= _run_case(k2, n=300, d=256, g=3, pool_tile_n=128)

    if ok:
        print("KERNEL_OK")
    else:
        print("MISMATCH")
</pallas_src>

<mosaic_0001>
module attributes {stable_mosaic.version = 11 : i64} {
  func.func @_pool_kernel(%arg0: i32, %arg1: i32, %arg2: memref<1x16xi32, #tpu.memory_space<vmem>>, %arg3: memref<16x32xf32, #tpu.memory_space<vmem>>, %arg4: memref<16x32xf32, #tpu.memory_space<vmem>>, %arg5: memref<16x32xf32, #tpu.memory_space<vmem>>, %arg6: memref<16x1xf32, #tpu.memory_space<vmem>>) attributes {dimension_semantics = [#tpu.dimension_semantics<parallel>, #tpu.dimension_semantics<arbitrary>], iteration_bounds = array<i64: 1, 1>, scalar_prefetch = 0 : i64, scratch_operands = 2 : i64, tpu.core_type = #tpu.core_type<tc>, window_params = [{transform_indices = @transform_0, window_bounds = array<i64: 1, 16>}, {transform_indices = @transform_1, window_bounds = array<i64: 16, 32>}, {transform_indices = @transform_2, window_bounds = array<i64: 16, 32>}]} {
    %c0_i32 = arith.constant 0 : i32
    %0 = arith.cmpi eq, %arg1, %c0_i32 : i32
    %1 = arith.extui %0 : i1 to i32
    %c0_i32_0 = arith.constant 0 : i32
    %2 = arith.cmpi ne, %1, %c0_i32_0 : i32
    scf.if %2 {
      %cst_15 = arith.constant 0.000000e+00 : f32
      %24 = vector.broadcast %cst_15 : f32 to vector<16x32xf32>
      %c0_16 = arith.constant 0 : index
      %c0_17 = arith.constant 0 : index
      %25 = vector.load %arg5[%c0_16, %c0_17] : memref<16x32xf32, #tpu.memory_space<vmem>>, vector<16x32xf32>
      tpu.vector_store %arg5[%c0_16, %c0_17], %24 {strides = array<i32>} : memref<16x32xf32, #tpu.memory_space<vmem>>, vector<16x32xf32>,
      %cst_18 = arith.constant 0.000000e+00 : f32
      %26 = vector.broadcast %cst_18 : f32 to vector<16x1xf32>
      %c0_19 = arith.constant 0 : index
      %c0_20 = arith.constant 0 : index
      %27 = vector.load %arg6[%c0_19, %c0_20] : memref<16x1xf32, #tpu.memory_space<vmem>>, vector<16x1xf32>
      tpu.vector_store %arg6[%c0_19, %c0_20], %26 {strides = array<i32>} : memref<16x1xf32, #tpu.memory_space<vmem>>, vector<16x1xf32>,
    } else {
    }
    %c0 = arith.constant 0 : index
    %c0_1 = arith.constant 0 : index
    %3 = vector.load %arg2[%c0, %c0_1] : memref<1x16xi32, #tpu.memory_space<vmem>>, vector<1x16xi32>
    %4 = tpu.iota {dimensions = array<i32: 0>} : vector<16x16xi32>
    %5 = vector.broadcast %3 : vector<1x16xi32> to vector<16x16xi32>
    %6 = arith.cmpi eq, %4, %5 : vector<16x16xi32>
    %c0_2 = arith.constant 0 : index
    %c0_3 = arith.constant 0 : index
    %7 = vector.load %arg3[%c0_2, %c0_3] : memref<16x32xf32, #tpu.memory_space<vmem>>, vector<16x32xf32>
    %8 = arith.extui %6 : vector<16x16xi1> to vector<16x16xi32>
    %9 = arith.sitofp %8 : vector<16x16xi32> to vector<16x16xf32>
    %c0_4 = arith.constant 0 : index
    %c0_5 = arith.constant 0 : index
    %10 = vector.load %arg5[%c0_4, %c0_5] : memref<16x32xf32, #tpu.memory_space<vmem>>, vector<16x32xf32>
    %cst = arith.constant dense<0.000000e+00> : vector<16x32xf32>
    %11 = tpu.matmul %9, %7, %cst {dimension_numbers = #tpu.dot_dimension_numbers<[1], [0], [0], [1], [0, 0, 1, 1], [], []>} : vector<16x16xf32>, vector<16x32xf32>, vector<16x32xf32> -> vector<16x32xf32>
    %12 = arith.addf %10, %11 : vector<16x32xf32>
    %c0_6 = arith.constant 0 : index
    %c0_7 = arith.constant 0 : index
    %13 = vector.load %arg5[%c0_6, %c0_7] : memref<16x32xf32, #tpu.memory_space<vmem>>, vector<16x32xf32>
    tpu.vector_store %arg5[%c0_6, %c0_7], %12 {strides = array<i32>} : memref<16x32xf32, #tpu.memory_space<vmem>>, vector<16x32xf32>,
    %c0_8 = arith.constant 0 : index
    %c0_9 = arith.constant 0 : index
    %14 = vector.load %arg6[%c0_8, %c0_9] : memref<16x1xf32, #tpu.memory_space<vmem>>, vector<16x1xf32>
    %15 = arith.extui %6 : vector<16x16xi1> to vector<16x16xi32>
    %16 = arith.sitofp %15 : vector<16x16xi32> to vector<16x16xf32>
    %cst_10 = arith.constant dense<0.000000e+00> : vector<16xf32>
    %17 = vector.multi_reduction <add>, %16, %cst_10 [1] : vector<16x16xf32> to vector<16xf32>
    %18 = vector.shape_cast %17 : vector<16xf32> to vector<16x1xf32>
    %19 = arith.addf %14, %18 : vector<16x1xf32>
    %c0_11 = arith.constant 0 : index
    %c0_12 = arith.constant 0 : index
    %20 = vector.load %arg6[%c0_11, %c0_12] : memref<16x1xf32, #tpu.memory_space<vmem>>, vector<16x1xf32>
    tpu.vector_store %arg6[%c0_11, %c0_12], %19 {strides = array<i32>} : memref<16x1xf32, #tpu.memory_space<vmem>>, vector<16x1xf32>,
    %c0_i32_13 = arith.constant 0 : i32
    %21 = arith.cmpi eq, %arg1, %c0_i32_13 : i32
    %22 = arith.extui %21 : i1 to i32
    %c0_i32_14 = arith.constant 0 : i32
    %23 = arith.cmpi ne, %22, %c0_i32_14 : i32
    scf.if %23 {
      %c0_15 = arith.constant 0 : index
      %c0_16 = arith.constant 0 : index
      %24 = vector.load %arg5[%c0_15, %c0_16] : memref<16x32xf32, #tpu.memory_space<vmem>>, vector<16x32xf32>
      %c0_17 = arith.constant 0 : index
      %c0_18 = arith.constant 0 : index
      %25 = vector.load %arg6[%c0_17, %c0_18] : memref<16x1xf32, #tpu.memory_space<vmem>>, vector<16x1xf32>
      %cst_19 = arith.constant 1.000000e+00 : f32
      %26 = vector.broadcast %cst_19 : f32 to vector<16x1xf32>
      %27 = arith.maximumf %25, %26 : vector<16x1xf32>
      %28 = vector.broadcast %27 : vector<16x1xf32> to vector<16x32xf32>
      %29 = arith.divf %24, %28 : vector<16x32xf32>
      %c0_20 = arith.constant 0 : index
      %c0_21 = arith.constant 0 : index
      %30 = vector.load %arg4[%c0_20, %c0_21] : memref<16x32xf32, #tpu.memory_space<vmem>>, vector<16x32xf32>
      tpu.vector_store %arg4[%c0_20, %c0_21], %29 {strides = array<i32>} : memref<16x32xf32, #tpu.memory_space<vmem>>, vector<16x32xf32>,
    } else {
    }
    return
  }
  func.func @transform_0(%arg0: i32, %arg1: i32) -> (i32, i32) {
    %c0_i32 = arith.constant 0 : i32
    %c0_i32_0 = arith.constant 0 : i32
    return %c0_i32, %arg1 : i32, i32
  }
  func.func @transform_1(%arg0: i32, %arg1: i32) -> (i32, i32) {
    %c0_i32 = arith.constant 0 : i32
    return %arg1, %arg0 : i32, i32
  }
  func.func @transform_2(%arg0: i32, %arg1: i32) -> (i32, i32) {
    %c0_i32 = arith.constant 0 : i32
    %c0_i32_0 = arith.constant 0 : i32
    return %c0_i32, %arg0 : i32, i32
  }
}

</mosaic_0001>

<llo_original>
// kernel: tpu_custom_call.1
$region0: #{tpu_custom_call.1}
  #allocation0 [shape = 'u32[]', space=smem, size = 0x4, offset = 0x4, fixed_abs, tag = 'smem constant byte address 0x4 - core index']
  #allocation1 [shape = 'u32[144,128]{1,0:T(1,128)}', space=vmem, size = 0x12000, scoped, tag = 'internal scratch']
  #allocation2 [shape = 'f32[16,32]{1,0:T(8,128)}', space=vmem, size = 0x2000, scoped, tag = 'scratch operand']
  #allocation3 [shape = 'f32[16,1]{1,0:T(8,128)}', space=vmem, size = 0x2000, scoped, tag = 'scratch operand']
  %s0 = inlined_call_operand.hbm [shape: s32[1,16], index: 0, kind: input, shape index: {}]
  %s1 = inlined_call_operand.hbm [shape: f32[16,32], index: 1, kind: input, shape index: {}]
  %s2 = inlined_call_operand.hbm [shape: f32[16,32], index: 2, kind: output, shape index: {}]
  %s3 = sld [smem:[#allocation0]]
  $region34: #{tpu_custom_call.1} parent=0
    _
  %s5 = ssub.s32 1, %s3
  %s6 = scalar_select 0, %s5, %s3
  $region1: #{tpu_custom_call.1} parent=0
    #allocation4 [shape = 'u8[512]{0}', space=vmem, size = 0x400, scoped, tag = 'input window, operand 0, single buffered']
    #allocation5 [shape = 's32[1]{0}', space=sflag, size = 0x4, scoped, tag = 'scoped memory for tpu_custom_call.1']
    #allocation6 [shape = 's32[1]{0}', space=sflag, size = 0x4, scoped, tag = 'scoped memory for tpu_custom_call.1']
    #allocation7 [shape = 'u8[8192]{0}', space=vmem, size = 0x2000, scoped, tag = 'input window, operand 1, single buffered']
    #allocation8 [shape = 's32[1]{0}', space=sflag, size = 0x4, scoped, tag = 'scoped memory for tpu_custom_call.1']
    #allocation9 [shape = 'u8[8192]{0}', space=vmem, size = 0x2000, scoped, tag = 'output window, operand 0, single buffered']
    %7 = vsyncpa [#allocation5], 0
    %8 = vsyncpa [#allocation8], 0
    %9 = vsyncpa [#allocation6], 0
    // Predicated region
    $region2: #{tpu_custom_call.1} parent=1 // pred_check
      _
    $region3: #{tpu_custom_call.1} parent=1 // pred_check_branch
      %11 = sbr.rel (0) target = $region5
    $region4: #{tpu_custom_call.1} parent=1 // pred_region
      %s13 = ssub.s32 16, 16
      %14 = vsyncadd [#allocation5], %s13
      %s16 = sshll.u32 [#allocation4], 4
      %s17 = int_to_ptr.vmem [resolvable:$true] %s16
      %19 = dma.hbm_to_vmem [thread:$0]  %s0, 16, %s17, [#allocation5]
    $region5: #{tpu_custom_call.1} parent=1 // pred_fallthru
      _
    // Predicated region
    $region6: #{tpu_custom_call.1} parent=1 // pred_check
      _
    $region7: #{tpu_custom_call.1} parent=1 // pred_check_branch
      %21 = sbr.rel (0) target = $region9
    $region8: #{tpu_custom_call.1} parent=1 // pred_region
      %s23 = ssub.s32 256, 256
      %24 = vsyncadd [#allocation8], %s23
      %s25 = sshll.u32 [#allocation7], 4
      %s26 = int_to_ptr.vmem [resolvable:$true] %s25
      %31 = dma.hbm_to_vmem [thread:$0]  %s1, 256, %s26, [#allocation8], 128, 128, 8
    $region9: #{tpu_custom_call.1} parent=1 // pred_fallthru
      _
    // Predicated region
    $region10: #{tpu_custom_call.1} parent=1 // pred_check
      _
    $region11: #{tpu_custom_call.1} parent=1 // pred_check_branch
      %33 = sbr.rel (0) target = $region13
    $region12: #{tpu_custom_call.1} parent=1 // pred_region
      %34 = dma.done [#allocation5], 16
    $region13: #{tpu_custom_call.1} parent=1 // pred_fallthru
      _
    // Predicated region
    $region14: #{tpu_custom_call.1} parent=1 // pred_check
      _
    $region15: #{tpu_custom_call.1} parent=1 // pred_check_branch
      %36 = sbr.rel (0) target = $region17
    $region16: #{tpu_custom_call.1} parent=1 // pred_region
      %37 = dma.done [#allocation8], 256
    $region17: #{tpu_custom_call.1} parent=1 // pred_fallthru
      _
    %p38 = scmp.eq.s32.totalorder 0, 0
    // Predicated region
    $region18: #{tpu_custom_call.1} parent=1 // pred_check
      %p39 = pneg %p38
    $region19: #{tpu_custom_call.1} parent=1 // pred_check_branch
      %41 = sbr.rel (%p39) target = $region21
    $region20: #{tpu_custom_call.1} parent=1 // pred_region
      %vm42 = vcmask 261120
      %43 = vst.msk [vmem:[#allocation2] sm:$0xff] %vm42, 0.0
      %44 = vst.msk [vmem:[#allocation2 + $0x8] sm:$0xff] %vm42, 0.0
      %vm45 = vcmask 7168
      %46 = vst.msk [vmem:[#allocation3] sm:$0xff] %vm45, 0.0
      %47 = vst.msk [vmem:[#allocation3 + $0x8] sm:$0xff] %vm45, 0.0
    $region21: #{tpu_custom_call.1} parent=1 // pred_fallthru
      _
    %v48 = vld [vmem:[#allocation4] sm:$0x1]
    %v49 = vlaneseq
    %v50 = vshrl.u32 %v49, 7
    %v51 = vadd.s32 %v50, 8
    %v52 = vlaneseq
    %v53 = vshrl.u32 %v52, 7
    %v54 = vsub.s32 0, %v53
    %v55 = vrot.slane %v48, %v54
    %vm56 = vcmp.eq.s32.totalorder %v50, %v55
    %vm57 = vcmp.eq.s32.totalorder %v51, %v55
    %v58 = vld [vmem:[#allocation7] sm:$0xff]
    %v59 = vld [vmem:[#allocation7 + $0x8] sm:$0xff]
    %v60 = vsel %vm56, 1, 0
    %v61 = vsel %vm57, 1, 0
    %v62 = vcvt.s32.f32 %v60
    %v63 = vcvt.s32.f32 %v61
    %v64 = vld [vmem:[#allocation2] sm:$0xff]
    %v65 = vld [vmem:[#allocation2 + $0x8] sm:$0xff]
    %vm66 = vcmask 130048
    %v68 = vsel %vm66, %v62, 0
    %v71 = vsel %vm66, %v63, 0
    %73 = vmatprep.subr.mxu0 0.0
    %74 = vmatpush1.msra.mxu0 %v58
    %75 = vmatprep.subr.mxu0 0.0
    %76 = vmatpush1.msra.mxu0 %v59
    %77 = vmatprep.subr.mxu0 0.0
    %78 = vmatpush1.msra.mxu0 0.0
    %79 = vmatprep.subr.mxu0 0.0
    %80 = vmatpush1.msra.mxu0 0.0
    %81 = vmatprep.subr.mxu0 0.0
    %82 = vmatpush1.msra.mxu0 0.0
    %83 = vmatprep.subr.mxu0 0.0
    %84 = vmatpush1.msra.mxu0 0.0
    %85 = vmatprep.subr.mxu0 0.0
    %86 = vmatpush1.msra.mxu0 0.0
    %87 = vmatprep.subr.mxu0 0.0
    %88 = vmatpush1.msra.mxu0 0.0
    %89 = vmatprep.subr.mxu0 0.0
    %90 = vmatpush1.msra.mxu0 0.0
    %91 = vmatprep.subr.mxu0 0.0
    %92 = vmatpush1.msra.mxu0 0.0
    %93 = vmatprep.subr.mxu0 0.0
    %94 = vmatpush1.msra.mxu0 0.0
    %95 = vmatprep.subr.mxu0 0.0
    %96 = vmatpush1.msra.mxu0 0.0
    %97 = vmatprep.subr.mxu0 0.0
    %98 = vmatpush1.msra.mxu0 0.0
    %99 = vmatprep.subr.mxu0 0.0
    %100 = vmatpush1.msra.mxu0 0.0
    %101 = vmatprep.subr.mxu0 0.0
    %102 = vmatpush1.msra.mxu0 0.0
    %103 = vmatprep.subr.mxu0 0.0
    %104 = vmatpush1.msra.mxu0 0.0
    %105 = vmatprep.subr.mxu0 0.0
    %106 = vmatpush1.msra.mxu0 0.0
    %107 = vmatprep.subr.mxu0 0.0
    %108 = vmatpush1.msra.mxu0 0.0
    %109 = vmatprep.subr.mxu0 0.0
    %110 = vmatpush1.msra.mxu0 0.0
    %111 = vmatprep.subr.mxu0 0.0
    %112 = vmatpush1.msra.mxu0 0.0
    %113 = vmatprep.subr.mxu0 0.0
    %114 = vmatpush1.msra.mxu0 0.0
    %115 = vmatprep.subr.mxu0 0.0
    %116 = vmatpush1.msra.mxu0 0.0
    %117 = vmatprep.subr.mxu0 0.0
    %118 = vmatpush1.msra.mxu0 0.0
    %119 = vmatprep.subr.mxu0 0.0
    %120 = vmatpush1.msra.mxu0 0.0
    %121 = vmatprep.subr.mxu0 0.0
    %122 = vmatpush1.msra.mxu0 0.0
    %123 = vmatprep.subr.mxu0 0.0
    %124 = vmatpush1.msra.mxu0 0.0
    %125 = vmatprep.subr.mxu0 0.0
    %126 = vmatpush1.msra.mxu0 0.0
    %127 = vmatprep.subr.mxu0 0.0
    %128 = vmatpush1.msra.mxu0 0.0
    %129 = vmatprep.subr.mxu0 0.0
    %130 = vmatpush1.msra.mxu0 0.0
    %131 = vmatprep.subr.mxu0 0.0
    %132 = vmatpush1.msra.mxu0 0.0
    %133 = vmatprep.subr.mxu0 0.0
    %134 = vmatpush1.msra.mxu0 0.0
    %135 = vmatprep.subr.mxu0 0.0
    %136 = vmatpush1.msra.mxu0 0.0
    %137 = vmatprep.mubr.f32.mxu0 0.0
    %138 = vmatmul.mubr.f32.gmra.mrb[0].mxu0 %v68
    %v139 = vpop.f32.mrb[0].mxu0
    %v140 = vadd.f32 0.0, %v139
    %v141 = vpop.f32.mrb[0].mxu0
    %142 = vmatprep.mubr.f32.mxu0 0.0
    %143 = vmatmul.mubr.f32.gmra.mrb[0].mxu0 %v71
    %v144 = vpop.f32.mrb[0].mxu0
    %v145 = vadd.f32 0.0, %v144
    %v146 = vpop.f32.mrb[0].mxu0
    %147 = vdwg.mxu0
    %v148 = vadd.f32 %v64, %v140
    %v149 = vadd.f32 %v65, %v145
    %vm150 = vcmask 261120
    %151 = vst.msk [vmem:[#allocation2] sm:$0xff] %vm150, %v148
    %152 = vst.msk [vmem:[#allocation2 + $0x8] sm:$0xff] %vm150, %v149
    %v153 = vld [vmem:[#allocation3] sm:$0xff]
    %v154 = vld [vmem:[#allocation3 + $0x8] sm:$0xff]
    %v155 = vsel %vm66, %v62, 0.0
    %156 = vadd.xlane.f32.xlu0 %v155
    %v157 = vpop.xlane.xlu0 %156
    %v158 = vsel %vm66, %v63, 0.0
    %159 = vadd.xlane.f32.xlu0 %v158
    %v160 = vpop.xlane.xlu0 %159
    %v161 = vadd.f32 %v153, %v157
    %v162 = vadd.f32 %v154, %v160
    %vm163 = vcmask 7168
    %164 = vst.msk [vmem:[#allocation3] sm:$0xff] %vm163, %v161
    %165 = vst.msk [vmem:[#allocation3 + $0x8] sm:$0xff] %vm163, %v162
    // Predicated region
    $region22: #{tpu_custom_call.1} parent=1 // pred_check
      %p166 = pneg %p38
    $region23: #{tpu_custom_call.1} parent=1 // pred_check_branch
      %168 = sbr.rel (%p166) target = $region25
    $region24: #{tpu_custom_call.1} parent=1 // pred_region
      %v169 = vld [vmem:[#allocation2] sm:$0xff]
      %v170 = vld [vmem:[#allocation2 + $0x8] sm:$0xff]
      %v171 = vld [vmem:[#allocation3] sm:$0xff]
      %v172 = vld [vmem:[#allocation3 + $0x8] sm:$0xff]
      %v173 = vmax.f32 %v171, 1.0
      %v174 = vmax.f32 %v172, 1.0
      %176 = vset.pattern.permute.xlu0 0
      %177 = vperm.xlu0 %176, %v173
      %v178 = vpop.permute.xlu0 %177
      %181 = vset.pattern.permute.xlu0 0
      %182 = vperm.xlu0 %181, %v174
      %v183 = vpop.permute.xlu0 %182
      %v185 = vrcp.pop %v178
      %v186 = vmul.f32 %v169, %v185
      %v187 = vrcp.pop %v183
      %v188 = vmul.f32 %v170, %v187
      %189 = vst.msk [vmem:[#allocation9] sm:$0xff] %vm150, %v186
      %190 = vst.msk [vmem:[#allocation9 + $0x8] sm:$0xff] %vm150, %v188
    $region25: #{tpu_custom_call.1} parent=1 // pred_fallthru
      _
    // Predicated region
    $region26: #{tpu_custom_call.1} parent=1 // pred_check
      _
    $region27: #{tpu_custom_call.1} parent=1 // pred_check_branch
      %192 = sbr.rel (0) target = $region29
    $region28: #{tpu_custom_call.1} parent=1 // pred_region
      %s194 = ssub.s32 256, 256
      %195 = vsyncadd [#allocation6], %s194
      %s196 = sshll.u32 [#allocation9], 4
      %s197 = int_to_ptr.vmem [resolvable:$true] %s196
      %202 = dma.vmem_to_hbm [thread:$0]  %s197, 256, %s2, [#allocation6], 128, 128, 8
    $region29: #{tpu_custom_call.1} parent=1 // pred_fallthru
      _
    // Predicated region
    $region30: #{tpu_custom_call.1} parent=1 // pred_check
      _
    $region31: #{tpu_custom_call.1} parent=1 // pred_check_branch
      %204 = sbr.rel (0) target = $region33
    $region32: #{tpu_custom_call.1} parent=1 // pred_region
      %205 = dma.done [#allocation6], 256
    $region33: #{tpu_custom_call.1} parent=1 // pred_fallthru
      _
    %206 = vsyncpa [#allocation5], 1
    %207 = vsyncpa [#allocation8], 1
    %208 = vsyncpa [#allocation6], 1

</llo_original>
